<compile_context>
chip_gen: v5e
topology: v5e:2x2
jax: 0.10.0
libtpu: 0.0.40
codegen_flags: <defaults>
</compile_context>

<pallas_src>
import functools

import jax
import jax.numpy as jnp
from jax import lax
from jax.experimental import pallas as pl
from jax.experimental.pallas import tpu as pltpu

TOP_K_PERCENT = 0.04
EPS = 1e-5


def _round_up(x, m):
    return (x + m - 1) // m * m


def _lrp_conv2d_kernel(thr_ref,        # (B,) f32 in SMEM (scalar prefetch): per-sample top-k threshold
                       a_ref,          # (1, Cin_p, Lbig)  zero-padded, flattened activations
                       r_ref,          # (1, Cout_p, Lp)   zero-padded, flattened incoming relevance
                       wf_ref,         # (Cout_p, K*Cin_p) im2col matrix of clamped weights
                       wt_ref,         # (Cin_p, K*Cout_p) im2col matrix for the transposed conv
                       out_ref,        # (1, Cin_p, Lp)    propagated relevance (flat layout)
                       patches_a_ref,  # VMEM (K*Cin_p, Lp)   im2col patches of a
                       s_big_ref,      # VMEM (Cout_p, Lbig)  s with halo margins
                       patches_s_ref,  # VMEM (K*Cout_p, Lp)  im2col patches of s
                       *, lp, margin, shifts, cin_p, cout_p):
    b = pl.program_id(0)

    # The halo margins of s_big_ref are only ever read for border outputs that are
    # multiplied by a == 0 and sliced away on the host; zero them once at grid step 0
    # instead of re-zeroing the whole scratch every step (interior is overwritten below).
    @pl.when(b == 0)
    def _init():
        s_big_ref[...] = jnp.zeros(s_big_ref.shape, s_big_ref.dtype)

    a_big = a_ref[0]                     # (Cin_p, Lbig)
    r = r_ref[0]                         # (Cout_p, Lp), float32
    thr = thr_ref[b]                     # scalar threshold for this sample

    # --- z = conv2d(a, W+) + eps: ONE fused im2col matmul (K = KH*KW*Cin_p) -------------
    for t, sh in enumerate(shifts):      # static unroll over the KH*KW taps
        patches_a_ref[pl.ds(t * cin_p, cin_p), :] = a_big[:, margin + sh:margin + sh + lp]
    z = jnp.dot(wf_ref[...], patches_a_ref[...],
                preferred_element_type=jnp.float32) + EPS          # (Cout_p, Lp)

    # relevance_filter: keep only values >= the k-th largest of this sample.
    r_f = jnp.where(r >= thr, r, 0.0)
    # approx=True would push the reciprocal onto the (idle) EUP; kept exact so the f32
    # reference tolerance (1e-3 / 1e-4) holds.
    s = r_f * pl.reciprocal(z, approx=False)                       # (Cout_p, Lp)

    # --- c = grad_a[ sum(conv2d(a) * s) ] (transposed conv): second fused im2col matmul --
    s_big_ref[:, pl.ds(margin, lp)] = s.astype(s_big_ref.dtype)
    s_big = s_big_ref[...]
    for t, sh in enumerate(shifts):
        patches_s_ref[pl.ds(t * cout_p, cout_p), :] = s_big[:, margin - sh:margin - sh + lp]
    c = jnp.dot(wt_ref[...], patches_s_ref[...],
                preferred_element_type=jnp.float32)                # (Cin_p, Lp)

    a_center = a_big[:, margin:margin + lp].astype(jnp.float32)
    out_ref[0] = a_center * c


def relevance_propagation_conv2d(a_nchw, r_nchw, weight_oihw, *, padding=1,
                                 matmul_dtype=jnp.float32):
    """LRP z+ propagation through conv2d (stride 1, 'same' padding).  NCHW in, NCHW out.

    matmul_dtype: dtype of the MXU operands (activations / clamped weights / s).  float32
    by default; jnp.bfloat16 roughly doubles MXU throughput and halves DMA bytes on
    v6e/v7x at a small accuracy cost.
    """
    B, Cin, H, W = a_nchw.shape
    Cout, Cin_w, KH, KW = weight_oihw.shape
    P = int(padding)
    assert Cin_w == Cin
    assert r_nchw.shape == (B, Cout, H, W)
    # Same assumption as the original usage: stride 1, 'same' padding (output H,W == input).
    assert KH == 2 * P + 1 and KW == 2 * P + 1, "kernel expects a stride-1 'same' convolution"

    Hp, Wq = H + 2 * P, W + 2 * P
    L = Hp * Wq                                # logical padded-flat spatial length
    Lp = _round_up(L, 128)                     # lane-dense working length (multiple of 128)
    margin = P * Wq + P                        # max |flat shift| over the KH*KW taps
    Lbig = Lp + 2 * margin
    Cin_p = _round_up(Cin, 8)                  # sublane-aligned channel counts
    Cout_p = _round_up(Cout, 8)
    K = KH * KW
    shifts = tuple((kh - P) * Wq + (kw - P) for kh in range(KH) for kw in range(KW))

    # z+ rule applied to parameters: clamp weights at 0, drop (zero) the bias.
    w_plus = jnp.maximum(weight_oihw.astype(jnp.float32), 0.0)
    # Forward im2col weight matrix: [o, t*Cin_p + i] = W+[o, i, kh, kw],  t = kh*KW + kw.
    wf = jnp.pad(jnp.transpose(w_plus, (0, 2, 3, 1)),
                 ((0, Cout_p - Cout), (0, 0), (0, 0), (0, Cin_p - Cin)))
    wf = wf.reshape(Cout_p, K * Cin_p).astype(matmul_dtype)
    # Transposed-conv im2col weight matrix: [i, t*Cout_p + o] = W+[o, i, kh, kw].
    wt = jnp.pad(jnp.transpose(w_plus, (1, 2, 3, 0)),
                 ((0, Cin_p - Cin), (0, 0), (0, 0), (0, Cout_p - Cout)))
    wt = wt.reshape(Cin_p, K * Cout_p).astype(matmul_dtype)

    # Activations / relevance stay in NCHW channel order; they are only spatially
    # zero-padded, flattened (spatial -> lane axis) and given flat margins so every tap
    # shift inside the kernel is a static in-bounds lane slice.
    a_flat = jnp.pad(a_nchw.astype(jnp.float32),
                     ((0, 0), (0, Cin_p - Cin), (P, P), (P, P))).reshape(B, Cin_p, L)
    a_big = jnp.pad(a_flat, ((0, 0), (0, 0), (margin, margin + Lp - L))).astype(matmul_dtype)

    r_pad = jnp.pad(r_nchw.astype(jnp.float32),
                    ((0, 0), (0, Cout_p - Cout), (P, P), (P, P))).reshape(B, Cout_p, L)
    r_pad = jnp.pad(r_pad, ((0, 0), (0, 0), (0, Lp - L)))

    # relevance_filter threshold: value of the k-th largest element per sample (glue reduction).
    # TODO(synk): torch.topk+scatter breaks exact ties by index; here all elements tied at the
    # threshold value are kept (equivalent for generic float inputs).
    r_flat = r_nchw.astype(jnp.float32).reshape(B, -1)
    k = max(1, int(TOP_K_PERCENT * r_flat.shape[-1]))
    thr = lax.top_k(r_flat, k)[0][:, -1]                           # (B,) f32 -> SMEM prefetch

    kernel = functools.partial(_lrp_conv2d_kernel, lp=Lp, margin=margin, shifts=shifts,
                               cin_p=Cin_p, cout_p=Cout_p)

    out_flat = pl.pallas_call(
        kernel,
        out_shape=jax.ShapeDtypeStruct((B, Cin_p, Lp), jnp.float32),
        grid_spec=pltpu.PrefetchScalarGridSpec(
            num_scalar_prefetch=1,                                  # thr -> SMEM
            grid=(B,),
            in_specs=[
                pl.BlockSpec((1, Cin_p, Lbig), lambda b, thr_ref: (b, 0, 0)),   # a (flat, padded)
                pl.BlockSpec((1, Cout_p, Lp), lambda b, thr_ref: (b, 0, 0)),    # r (flat, padded)
                pl.BlockSpec((Cout_p, K * Cin_p), lambda b, thr_ref: (0, 0)),   # W+ (im2col)
                pl.BlockSpec((Cin_p, K * Cout_p), lambda b, thr_ref: (0, 0)),   # W+^T (im2col)
            ],
            out_specs=pl.BlockSpec((1, Cin_p, Lp), lambda b, thr_ref: (b, 0, 0)),
            scratch_shapes=[
                pltpu.VMEM((K * Cin_p, Lp), matmul_dtype),    # im2col patches of a
                pltpu.VMEM((Cout_p, Lbig), matmul_dtype),     # s with halo margins
                pltpu.VMEM((K * Cout_p, Lp), matmul_dtype),   # im2col patches of s
            ],
        ),
        compiler_params=pltpu.CompilerParams(
            # Batch samples are independent: sharded across TensorCores on v7x, neutral on v5e/v6e.
            dimension_semantics=("parallel",),
        ),
    )(thr, a_big, r_pad, wf, wt)

    # Un-flatten: drop padded channels, margins/tail and the spatial halo ring.
    out = out_flat[:, :Cin, :L].reshape(B, Cin, Hp, Wq)[:, :, P:P + H, P:P + W]
    return out


def _reference(a_nchw, r_nchw, weight_oihw, padding=1):
    """Pure-JAX reference mirroring the PyTorch forward (autograd via jax.vjp)."""
    B = a_nchw.shape[0]
    w_plus = jnp.maximum(weight_oihw, 0.0)
    r_flat = r_nchw.reshape(B, -1)
    k = max(1, int(TOP_K_PERCENT * r_flat.shape[-1]))
    thr = jax.lax.top_k(r_flat, k)[0][:, -1]
    r_f = jnp.where(r_flat >= thr[:, None], r_flat, 0.0).reshape(r_nchw.shape)

    def conv(a):
        return lax.conv_general_dilated(
            a, w_plus, window_strides=(1, 1),
            padding=((padding, padding), (padding, padding)),
            dimension_numbers=('NCHW', 'OIHW', 'NCHW')) + EPS

    z, vjp = jax.vjp(conv, a_nchw)
    s = r_f / z
    c = vjp(s)[0]
    return a_nchw * c


if __name__ == "__main__":
    key = jax.random.PRNGKey(0)
    k1, k2, k3 = jax.random.split(key, 3)
    B, Cin, Cout, H, W, K = 2, 4, 8, 16, 16, 3

    # Positive activations (post-ReLU), as assumed by the z+ rule.
    a = jax.random.uniform(k1, (B, Cin, H, W), jnp.float32, minval=0.1, maxval=1.0)
    r = jax.random.uniform(k2, (B, Cout, H, W), jnp.float32, minval=0.0, maxval=1.0)
    weight = jax.random.normal(k3, (Cout, Cin, K, K), jnp.float32)  # deterministic Conv2d weight

    out = jax.block_until_ready(relevance_propagation_conv2d(a, r, weight))
    ref = _reference(a, r, weight)

    assert out.shape == (B, Cin, H, W)
    assert jnp.allclose(out, ref, rtol=1e-3, atol=1e-4), float(jnp.max(jnp.abs(out - ref)))
    print("KERNEL_OK")
</pallas_src>

<mosaic_0001>
module attributes {stable_mosaic.version = 11 : i64} {
  func.func @_lrp_conv2d_kernel(%arg0: i32, %arg1: memref<2xf32, #tpu.memory_space<smem>>, %arg2: memref<1x8x422xf32, #tpu.memory_space<vmem>>, %arg3: memref<1x8x384xf32, #tpu.memory_space<vmem>>, %arg4: memref<8x72xf32, #tpu.memory_space<vmem>>, %arg5: memref<8x72xf32, #tpu.memory_space<vmem>>, %arg6: memref<1x8x384xf32, #tpu.memory_space<vmem>>, %arg7: memref<72x384xf32, #tpu.memory_space<vmem>>, %arg8: memref<8x422xf32, #tpu.memory_space<vmem>>, %arg9: memref<72x384xf32, #tpu.memory_space<vmem>>) attributes {dimension_semantics = [#tpu.dimension_semantics<parallel>], iteration_bounds = array<i64: 2>, scalar_prefetch = 1 : i64, scratch_operands = 3 : i64, tpu.core_type = #tpu.core_type<tc>, window_params = [{transform_indices = @transform_0, window_bounds = array<i64: 1, 8, 422>}, {transform_indices = @transform_1, window_bounds = array<i64: 1, 8, 384>}, {pipeline_mode = #tpu.pipeline_mode<synchronous>, transform_indices = @transform_2, window_bounds = array<i64: 8, 72>}, {pipeline_mode = #tpu.pipeline_mode<synchronous>, transform_indices = @transform_3, window_bounds = array<i64: 8, 72>}, {transform_indices = @transform_4, window_bounds = array<i64: 1, 8, 384>}]} {
    %c0_i32 = arith.constant 0 : i32
    %0 = arith.cmpi eq, %arg0, %c0_i32 : i32
    %1 = arith.extui %0 : i1 to i32
    %c0_i32_0 = arith.constant 0 : i32
    %2 = arith.cmpi ne, %1, %c0_i32_0 : i32
    scf.if %2 {
      %cst_51 = arith.constant 0.000000e+00 : f32
      %66 = vector.broadcast %cst_51 : f32 to vector<8x422xf32>
      %c0_52 = arith.constant 0 : index
      %c0_53 = arith.constant 0 : index
      %67 = vector.load %arg8[%c0_52, %c0_53] : memref<8x422xf32, #tpu.memory_space<vmem>>, vector<8x422xf32>
      tpu.vector_store %arg8[%c0_52, %c0_53], %66 {strides = array<i32>} : memref<8x422xf32, #tpu.memory_space<vmem>>, vector<8x422xf32>,
    } else {
    }
    %c0 = arith.constant 0 : index
    %c0_1 = arith.constant 0 : index
    %c0_2 = arith.constant 0 : index
    %3 = vector.load %arg2[%c0, %c0_1, %c0_2] : memref<1x8x422xf32, #tpu.memory_space<vmem>>, vector<1x8x422xf32>
    %4 = vector.shape_cast %3 : vector<1x8x422xf32> to vector<8x422xf32>
    %c0_3 = arith.constant 0 : index
    %c0_4 = arith.constant 0 : index
    %c0_5 = arith.constant 0 : index
    %5 = vector.load %arg3[%c0_3, %c0_4, %c0_5] : memref<1x8x384xf32, #tpu.memory_space<vmem>>, vector<1x8x384xf32>
    %6 = vector.shape_cast %5 : vector<1x8x384xf32> to vector<8x384xf32>
    %7 = arith.index_cast %arg0 : i32 to index
    %8 = memref.load %arg1[%7] : memref<2xf32, #tpu.memory_space<smem>>
    %9 = vector.extract_strided_slice %4 {offsets = [0, 0], sizes = [8, 384], strides = [1, 1]} : vector<8x422xf32> to vector<8x384xf32>
    %c0_6 = arith.constant 0 : index
    %c0_7 = arith.constant 0 : index
    %10 = vector.load %arg7[%c0_6, %c0_7] : memref<72x384xf32, #tpu.memory_space<vmem>>, vector<8x384xf32>
    tpu.vector_store %arg7[%c0_6, %c0_7], %9 {strides = array<i32>} : memref<72x384xf32, #tpu.memory_space<vmem>>, vector<8x384xf32>,
    %11 = vector.extract_strided_slice %4 {offsets = [0, 1], sizes = [8, 384], strides = [1, 1]} : vector<8x422xf32> to vector<8x384xf32>
    %c8 = arith.constant 8 : index
    %c0_8 = arith.constant 0 : index
    %12 = vector.load %arg7[%c8, %c0_8] : memref<72x384xf32, #tpu.memory_space<vmem>>, vector<8x384xf32>
    tpu.vector_store %arg7[%c8, %c0_8], %11 {strides = array<i32>} : memref<72x384xf32, #tpu.memory_space<vmem>>, vector<8x384xf32>,
    %13 = vector.extract_strided_slice %4 {offsets = [0, 2], sizes = [8, 384], strides = [1, 1]} : vector<8x422xf32> to vector<8x384xf32>
    %c16 = arith.constant 16 : index
    %c0_9 = arith.constant 0 : index
    %14 = vector.load %arg7[%c16, %c0_9] : memref<72x384xf32, #tpu.memory_space<vmem>>, vector<8x384xf32>
    tpu.vector_store %arg7[%c16, %c0_9], %13 {strides = array<i32>} : memref<72x384xf32, #tpu.memory_space<vmem>>, vector<8x384xf32>,
    %15 = vector.extract_strided_slice %4 {offsets = [0, 18], sizes = [8, 384], strides = [1, 1]} : vector<8x422xf32> to vector<8x384xf32>
    %c24 = arith.constant 24 : index
    %c0_10 = arith.constant 0 : index
    %16 = vector.load %arg7[%c24, %c0_10] : memref<72x384xf32, #tpu.memory_space<vmem>>, vector<8x384xf32>
    tpu.vector_store %arg7[%c24, %c0_10], %15 {strides = array<i32>} : memref<72x384xf32, #tpu.memory_space<vmem>>, vector<8x384xf32>,
    %17 = vector.extract_strided_slice %4 {offsets = [0, 19], sizes = [8, 384], strides = [1, 1]} : vector<8x422xf32> to vector<8x384xf32>
    %c32 = arith.constant 32 : index
    %c0_11 = arith.constant 0 : index
    %18 = vector.load %arg7[%c32, %c0_11] : memref<72x384xf32, #tpu.memory_space<vmem>>, vector<8x384xf32>
    tpu.vector_store %arg7[%c32, %c0_11], %17 {strides = array<i32>} : memref<72x384xf32, #tpu.memory_space<vmem>>, vector<8x384xf32>,
    %19 = vector.extract_strided_slice %4 {offsets = [0, 20], sizes = [8, 384], strides = [1, 1]} : vector<8x422xf32> to vector<8x384xf32>
    %c40 = arith.constant 40 : index
    %c0_12 = arith.constant 0 : index
    %20 = vector.load %arg7[%c40, %c0_12] : memref<72x384xf32, #tpu.memory_space<vmem>>, vector<8x384xf32>
    tpu.vector_store %arg7[%c40, %c0_12], %19 {strides = array<i32>} : memref<72x384xf32, #tpu.memory_space<vmem>>, vector<8x384xf32>,
    %21 = vector.extract_strided_slice %4 {offsets = [0, 36], sizes = [8, 384], strides = [1, 1]} : vector<8x422xf32> to vector<8x384xf32>
    %c48 = arith.constant 48 : index
    %c0_13 = arith.constant 0 : index
    %22 = vector.load %arg7[%c48, %c0_13] : memref<72x384xf32, #tpu.memory_space<vmem>>, vector<8x384xf32>
    tpu.vector_store %arg7[%c48, %c0_13], %21 {strides = array<i32>} : memref<72x384xf32, #tpu.memory_space<vmem>>, vector<8x384xf32>,
    %23 = vector.extract_strided_slice %4 {offsets = [0, 37], sizes = [8, 384], strides = [1, 1]} : vector<8x422xf32> to vector<8x384xf32>
    %c56 = arith.constant 56 : index
    %c0_14 = arith.constant 0 : index
    %24 = vector.load %arg7[%c56, %c0_14] : memref<72x384xf32, #tpu.memory_space<vmem>>, vector<8x384xf32>
    tpu.vector_store %arg7[%c56, %c0_14], %23 {strides = array<i32>} : memref<72x384xf32, #tpu.memory_space<vmem>>, vector<8x384xf32>,
    %25 = vector.extract_strided_slice %4 {offsets = [0, 38], sizes = [8, 384], strides = [1, 1]} : vector<8x422xf32> to vector<8x384xf32>
    %c64 = arith.constant 64 : index
    %c0_15 = arith.constant 0 : index
    %26 = vector.load %arg7[%c64, %c0_15] : memref<72x384xf32, #tpu.memory_space<vmem>>, vector<8x384xf32>
    tpu.vector_store %arg7[%c64, %c0_15], %25 {strides = array<i32>} : memref<72x384xf32, #tpu.memory_space<vmem>>, vector<8x384xf32>,
    %c0_16 = arith.constant 0 : index
    %c0_17 = arith.constant 0 : index
    %27 = vector.load %arg4[%c0_16, %c0_17] : memref<8x72xf32, #tpu.memory_space<vmem>>, vector<8x72xf32>
    %c0_18 = arith.constant 0 : index
    %c0_19 = arith.constant 0 : index
    %28 = vector.load %arg7[%c0_18, %c0_19] : memref<72x384xf32, #tpu.memory_space<vmem>>, vector<72x384xf32>
    %cst = arith.constant dense<0.000000e+00> : vector<8x384xf32>
    %29 = tpu.matmul %27, %28, %cst {dimension_numbers = #tpu.dot_dimension_numbers<[1], [0], [0], [1], [0, 0, 1, 1], [], []>} : vector<8x72xf32>, vector<72x384xf32>, vector<8x384xf32> -> vector<8x384xf32>
    %cst_20 = arith.constant 9.99999974E-6 : f32
    %30 = vector.broadcast %cst_20 : f32 to vector<8x384xf32>
    %31 = arith.addf %29, %30 : vector<8x384xf32>
    %32 = vector.broadcast %8 : f32 to vector<8x384xf32>
    %33 = arith.cmpf oge, %6, %32 : vector<8x384xf32>
    %cst_21 = arith.constant 0.000000e+00 : f32
    %34 = vector.broadcast %cst_21 : f32 to vector<8x384xf32>
    %35 = arith.select %33, %6, %34 : vector<8x384xi1>, vector<8x384xf32>
    %36 = tpu.reciprocal %31 : vector<8x384xf32> -> vector<8x384xf32>
    %37 = arith.mulf %35, %36 : vector<8x384xf32>
    %c0_22 = arith.constant 0 : index
    %c19 = arith.constant 19 : index
    %38 = vector.load %arg8[%c0_22, %c19] : memref<8x422xf32, #tpu.memory_space<vmem>>, vector<8x384xf32>
    tpu.vector_store %arg8[%c0_22, %c19], %37 {strides = array<i32>} : memref<8x422xf32, #tpu.memory_space<vmem>>, vector<8x384xf32>,
    %c0_23 = arith.constant 0 : index
    %c0_24 = arith.constant 0 : index
    %39 = vector.load %arg8[%c0_23, %c0_24] : memref<8x422xf32, #tpu.memory_space<vmem>>, vector<8x422xf32>
    %40 = vector.extract_strided_slice %39 {offsets = [0, 38], sizes = [8, 384], strides = [1, 1]} : vector<8x422xf32> to vector<8x384xf32>
    %c0_25 = arith.constant 0 : index
    %c0_26 = arith.constant 0 : index
    %41 = vector.load %arg9[%c0_25, %c0_26] : memref<72x384xf32, #tpu.memory_space<vmem>>, vector<8x384xf32>
    tpu.vector_store %arg9[%c0_25, %c0_26], %40 {strides = array<i32>} : memref<72x384xf32, #tpu.memory_space<vmem>>, vector<8x384xf32>,
    %42 = vector.extract_strided_slice %39 {offsets = [0, 37], sizes = [8, 384], strides = [1, 1]} : vector<8x422xf32> to vector<8x384xf32>
    %c8_27 = arith.constant 8 : index
    %c0_28 = arith.constant 0 : index
    %43 = vector.load %arg9[%c8_27, %c0_28] : memref<72x384xf32, #tpu.memory_space<vmem>>, vector<8x384xf32>
    tpu.vector_store %arg9[%c8_27, %c0_28], %42 {strides = array<i32>} : memref<72x384xf32, #tpu.memory_space<vmem>>, vector<8x384xf32>,
    %44 = vector.extract_strided_slice %39 {offsets = [0, 36], sizes = [8, 384], strides = [1, 1]} : vector<8x422xf32> to vector<8x384xf32>
    %c16_29 = arith.constant 16 : index
    %c0_30 = arith.constant 0 : index
    %45 = vector.load %arg9[%c16_29, %c0_30] : memref<72x384xf32, #tpu.memory_space<vmem>>, vector<8x384xf32>
    tpu.vector_store %arg9[%c16_29, %c0_30], %44 {strides = array<i32>} : memref<72x384xf32, #tpu.memory_space<vmem>>, vector<8x384xf32>,
    %46 = vector.extract_strided_slice %39 {offsets = [0, 20], sizes = [8, 384], strides = [1, 1]} : vector<8x422xf32> to vector<8x384xf32>
    %c24_31 = arith.constant 24 : index
    %c0_32 = arith.constant 0 : index
    %47 = vector.load %arg9[%c24_31, %c0_32] : memref<72x384xf32, #tpu.memory_space<vmem>>, vector<8x384xf32>
    tpu.vector_store %arg9[%c24_31, %c0_32], %46 {strides = array<i32>} : memref<72x384xf32, #tpu.memory_space<vmem>>, vector<8x384xf32>,
    %48 = vector.extract_strided_slice %39 {offsets = [0, 19], sizes = [8, 384], strides = [1, 1]} : vector<8x422xf32> to vector<8x384xf32>
    %c32_33 = arith.constant 32 : index
    %c0_34 = arith.constant 0 : index
    %49 = vector.load %arg9[%c32_33, %c0_34] : memref<72x384xf32, #tpu.memory_space<vmem>>, vector<8x384xf32>
    tpu.vector_store %arg9[%c32_33, %c0_34], %48 {strides = array<i32>} : memref<72x384xf32, #tpu.memory_space<vmem>>, vector<8x384xf32>,
    %50 = vector.extract_strided_slice %39 {offsets = [0, 18], sizes = [8, 384], strides = [1, 1]} : vector<8x422xf32> to vector<8x384xf32>
    %c40_35 = arith.constant 40 : index
    %c0_36 = arith.constant 0 : index
    %51 = vector.load %arg9[%c40_35, %c0_36] : memref<72x384xf32, #tpu.memory_space<vmem>>, vector<8x384xf32>
    tpu.vector_store %arg9[%c40_35, %c0_36], %50 {strides = array<i32>} : memref<72x384xf32, #tpu.memory_space<vmem>>, vector<8x384xf32>,
    %52 = vector.extract_strided_slice %39 {offsets = [0, 2], sizes = [8, 384], strides = [1, 1]} : vector<8x422xf32> to vector<8x384xf32>
    %c48_37 = arith.constant 48 : index
    %c0_38 = arith.constant 0 : index
    %53 = vector.load %arg9[%c48_37, %c0_38] : memref<72x384xf32, #tpu.memory_space<vmem>>, vector<8x384xf32>
    tpu.vector_store %arg9[%c48_37, %c0_38], %52 {strides = array<i32>} : memref<72x384xf32, #tpu.memory_space<vmem>>, vector<8x384xf32>,
    %54 = vector.extract_strided_slice %39 {offsets = [0, 1], sizes = [8, 384], strides = [1, 1]} : vector<8x422xf32> to vector<8x384xf32>
    %c56_39 = arith.constant 56 : index
    %c0_40 = arith.constant 0 : index
    %55 = vector.load %arg9[%c56_39, %c0_40] : memref<72x384xf32, #tpu.memory_space<vmem>>, vector<8x384xf32>
    tpu.vector_store %arg9[%c56_39, %c0_40], %54 {strides = array<i32>} : memref<72x384xf32, #tpu.memory_space<vmem>>, vector<8x384xf32>,
    %56 = vector.extract_strided_slice %39 {offsets = [0, 0], sizes = [8, 384], strides = [1, 1]} : vector<8x422xf32> to vector<8x384xf32>
    %c64_41 = arith.constant 64 : index
    %c0_42 = arith.constant 0 : index
    %57 = vector.load %arg9[%c64_41, %c0_42] : memref<72x384xf32, #tpu.memory_space<vmem>>, vector<8x384xf32>
    tpu.vector_store %arg9[%c64_41, %c0_42], %56 {strides = array<i32>} : memref<72x384xf32, #tpu.memory_space<vmem>>, vector<8x384xf32>,
    %c0_43 = arith.constant 0 : index
    %c0_44 = arith.constant 0 : index
    %58 = vector.load %arg5[%c0_43, %c0_44] : memref<8x72xf32, #tpu.memory_space<vmem>>, vector<8x72xf32>
    %c0_45 = arith.constant 0 : index
    %c0_46 = arith.constant 0 : index
    %59 = vector.load %arg9[%c0_45, %c0_46] : memref<72x384xf32, #tpu.memory_space<vmem>>, vector<72x384xf32>
    %cst_47 = arith.constant dense<0.000000e+00> : vector<8x384xf32>
    %60 = tpu.matmul %58, %59, %cst_47 {dimension_numbers = #tpu.dot_dimension_numbers<[1], [0], [0], [1], [0, 0, 1, 1], [], []>} : vector<8x72xf32>, vector<72x384xf32>, vector<8x384xf32> -> vector<8x384xf32>
    %61 = vector.extract_strided_slice %4 {offsets = [0, 19], sizes = [8, 384], strides = [1, 1]} : vector<8x422xf32> to vector<8x384xf32>
    %62 = arith.mulf %61, %60 : vector<8x384xf32>
    %c0_48 = arith.constant 0 : index
    %c0_49 = arith.constant 0 : index
    %c0_50 = arith.constant 0 : index
    %63 = vector.load %arg6[%c0_48, %c0_49, %c0_50] : memref<1x8x384xf32, #tpu.memory_space<vmem>>, vector<1x8x384xf32>
    %64 = vector.shape_cast %63 : vector<1x8x384xf32> to vector<8x384xf32>
    %65 = vector.shape_cast %62 : vector<8x384xf32> to vector<1x8x384xf32>
    tpu.vector_store %arg6[%c0_48, %c0_49, %c0_50], %65 {strides = array<i32>} : memref<1x8x384xf32, #tpu.memory_space<vmem>>, vector<1x8x384xf32>,
    return
  }
  func.func @transform_0(%arg0: i32, %arg1: memref<2xf32, #tpu.memory_space<smem>>) -> (i32, i32, i32) {
    %c0_i32 = arith.constant 0 : i32
    %c0_i32_0 = arith.constant 0 : i32
    %c0_i32_1 = arith.constant 0 : i32
    return %arg0, %c0_i32, %c0_i32_0 : i32, i32, i32
  }
  func.func @transform_1(%arg0: i32, %arg1: memref<2xf32, #tpu.memory_space<smem>>) -> (i32, i32, i32) {
    %c0_i32 = arith.constant 0 : i32
    %c0_i32_0 = arith.constant 0 : i32
    %c0_i32_1 = arith.constant 0 : i32
    return %arg0, %c0_i32, %c0_i32_0 : i32, i32, i32
  }
  func.func @transform_2(%arg0: i32, %arg1: memref<2xf32, #tpu.memory_space<smem>>) -> (i32, i32) {
    %c0_i32 = arith.constant 0 : i32
    %c0_i32_0 = arith.constant 0 : i32
    %c0_i32_1 = arith.constant 0 : i32
    return %c0_i32, %c0_i32_0 : i32, i32
  }
  func.func @transform_3(%arg0: i32, %arg1: memref<2xf32, #tpu.memory_space<smem>>) -> (i32, i32) {
    %c0_i32 = arith.constant 0 : i32
    %c0_i32_0 = arith.constant 0 : i32
    %c0_i32_1 = arith.constant 0 : i32
    return %c0_i32, %c0_i32_0 : i32, i32
  }
  func.func @transform_4(%arg0: i32, %arg1: memref<2xf32, #tpu.memory_space<smem>>) -> (i32, i32, i32) {
    %c0_i32 = arith.constant 0 : i32
    %c0_i32_0 = arith.constant 0 : i32
    %c0_i32_1 = arith.constant 0 : i32
    return %arg0, %c0_i32, %c0_i32_0 : i32, i32, i32
  }
}

</mosaic_0001>

<llo_original>
// kernel: tpu_custom_call.1
$region0: #{tpu_custom_call.1}
  #allocation0 [shape = 'u32[]', space=smem, size = 0x4, offset = 0x4, fixed_abs, tag = 'smem constant byte address 0x4 - core index']
  #allocation1 [shape = 'u32[72,128]{1,0:T(1,128)}', space=vmem, size = 0x9000, scoped, tag = 'internal scratch']
  #allocation2 [shape = 'f32[72,384]{1,0:T(8,128)}', space=vmem, size = 0x1b000, scoped, tag = 'scratch operand']
  #allocation3 [shape = 'f32[8,422]{1,0:T(8,128)}', space=vmem, size = 0x4000, scoped, tag = 'scratch operand']
  #allocation4 [shape = 'f32[72,384]{1,0:T(8,128)}', space=vmem, size = 0x1b000, scoped, tag = 'scratch operand']
  #allocation5 [shape = 's32[1]{0}', space=sflag, size = 0x4, scoped, tag = 'scoped memory for tpu_custom_call.1']
  #allocation6 [shape = 'u8[512]{0}', space=smem, size = 0x200, scoped, tag = 'prefetched SMEM operand 0']
  %s0 = inlined_call_operand.hbm [shape: f32[2], index: 0, kind: input, shape index: {}]
  %s1 = inlined_call_operand.hbm [shape: f32[2,8,422], index: 1, kind: input, shape index: {}]
  %s2 = inlined_call_operand.hbm [shape: f32[2,8,384], index: 2, kind: input, shape index: {}]
  %s3 = inlined_call_operand.hbm [shape: f32[8,72], index: 3, kind: input, shape index: {}]
  %s4 = inlined_call_operand.hbm [shape: f32[8,72], index: 4, kind: input, shape index: {}]
  %s5 = inlined_call_operand.hbm [shape: f32[2,8,384], index: 5, kind: output, shape index: {}]
  %s6 = sld [smem:[#allocation0]]
  $region69: #{tpu_custom_call.1} parent=0
    _
  %s8 = ssub.s32 1, %s6
  %s9 = scalar_select 0, %s8, %s6
  %s11 = sshll.u32 %s0, 4
  %s12 = int_to_ptr.hbm [resolvable:$true] %s11
  %14 = dma.hbm_to_smem %s12, 16, [#allocation6], [#allocation5]
  %16 = dma.done [#allocation5], 16
  %17 = sfence
  $region1: #{tpu_custom_call.1} parent=0
    #allocation7 [shape = 'u8[32768]{0}', space=vmem, size = 0x8000, scoped, tag = 'input window, operand 1']
    #allocation8 [shape = 's32[2]{0}', space=sflag, size = 0x8, scoped, tag = 'scoped memory for tpu_custom_call.1']
    #allocation9 [shape = 's32[2]{0}', space=sflag, size = 0x8, scoped, tag = 'scoped memory for tpu_custom_call.1']
    #allocation10 [shape = 'u8[24576]{0}', space=vmem, size = 0x6000, scoped, tag = 'input window, operand 2']
    #allocation11 [shape = 's32[2]{0}', space=sflag, size = 0x8, scoped, tag = 'scoped memory for tpu_custom_call.1']
    #allocation12 [shape = 'u8[4096]{0}', space=vmem, size = 0x1000, scoped, tag = 'input window, operand 3, single buffered']
    #allocation13 [shape = 'u8[4096]{0}', space=vmem, size = 0x1000, scoped, tag = 'input window, operand 4, single buffered']
    #allocation14 [shape = 's32[1]{0}', space=sflag, size = 0x4, scoped, tag = 'scoped memory for tpu_custom_call.1']
    #allocation15 [shape = 'u8[24576]{0}', space=vmem, size = 0x6000, scoped, tag = 'output window, operand 0']
    %18 = vsyncpa [#allocation8], 0
    %s19 = scalar_lea.sflag [#allocation8], 1
    %20 = vsyncpa %s19, 0
    %21 = vsyncpa [#allocation11], 0
    %s22 = scalar_lea.sflag [#allocation11], 1
    %23 = vsyncpa %s22, 0
    %24 = vsyncpa [#allocation14], 0
    %25 = vsyncpa [#allocation9], 0
    %s26 = scalar_lea.sflag [#allocation9], 1
    %27 = vsyncpa %s26, 0
    loop: start=0, step=1, limit=4
    $region2: #{tpu_custom_call.1} parent=1 // loop_pre_header
      _
    $region3: #{tpu_custom_call.1} parent=1 // loop_header
      %s29 = sphi 0, %s33
      %p30 = scmp.ge.s32.totalorder %s29, 4
      %s39 = sphi 0, %s41
      %s42 = sphi 0, %s39
      %s43 = sphi 0, %s42
      %s59 = sphi 0, %s43
      %s65 = sphi 0, %s67
      %s68 = sphi 0, %s65
      %s69 = sphi 0, %s68
      %s85 = sphi 0, %s69
      %s89 = sphi 0, %s89
      %s91 = sphi 0, %s89
      %s92 = sphi 0, %s91
      %s106 = sphi 0, %s92
      %s110 = sphi 0, %s110
      %s112 = sphi 0, %s110
      %s113 = sphi 0, %s112
      %s127 = sphi 0, %s113
      %s133 = sphi 0, %s135
      %s136 = sphi 0, %s133
      %s137 = sphi 0, %s136
      %s153 = sphi 0, %s137
    $region4: #{tpu_custom_call.1} parent=1 // loop_header_branch
      %32 = sbr.rel (%p30) target = $region8
    $region5: #{tpu_custom_call.1} parent=1 // loop_body
      %s34 = ssub.s32 %s29, 1
      %s35 = ssub.s32 %s29, 2
      %s36 = sadd.s32 %s29, 1
      %s37 = ssub.s32 %s29, %s36
      %p38 = scmp.eq.s32.totalorder %s37, 0
      %s40 = sadd.s32 %s39, 1
      %s41 = scalar_select %p38, %s39, %s40
      %p44 = pneg %p38
      %p45 = scmp.eq.s32.totalorder %s29, 1
      %p46 = por %p44, %p45
      %p47 = scmp.ne.s32.totalorder %s39, %s42
      %p48 = scmp.eq.s32.totalorder %s29, 0
      %p49 = por %p47, %p48
      %p50 = scmp.ne.s32.totalorder %s39, %s42
      %p51 = scmp.eq.s32.totalorder %s34, 1
      %p52 = por %p50, %p51
      %p53 = scmp.ne.s32.totalorder %s42, %s43
      %p54 = scmp.eq.s32.totalorder %s34, 0
      %p55 = por %p53, %p54
      %p56 = scmp.ne.s32.totalorder %s42, %s43
      %p57 = scmp.eq.s32.totalorder %s35, 1
      %p58 = por %p56, %p57
      %p60 = scmp.ne.s32.totalorder %s43, %s59
      %p61 = scmp.eq.s32.totalorder %s35, 0
      %p62 = por %p60, %p61
      %s63 = ssub.s32 %s29, %s36
      %p64 = scmp.eq.s32.totalorder %s63, 0
      %s66 = sadd.s32 %s65, 1
      %s67 = scalar_select %p64, %s65, %s66
      %p70 = pneg %p64
      %p71 = scmp.eq.s32.totalorder %s29, 1
      %p72 = por %p70, %p71
      %p73 = scmp.ne.s32.totalorder %s65, %s68
      %p74 = scmp.eq.s32.totalorder %s29, 0
      %p75 = por %p73, %p74
      %p76 = scmp.ne.s32.totalorder %s65, %s68
      %p77 = scmp.eq.s32.totalorder %s34, 1
      %p78 = por %p76, %p77
      %p79 = scmp.ne.s32.totalorder %s68, %s69
      %p80 = scmp.eq.s32.totalorder %s34, 0
      %p81 = por %p79, %p80
      %p82 = scmp.ne.s32.totalorder %s68, %s69
      %p83 = scmp.eq.s32.totalorder %s35, 1
      %p84 = por %p82, %p83
      %p86 = scmp.ne.s32.totalorder %s69, %s85
      %p87 = scmp.eq.s32.totalorder %s35, 0
      %p88 = por %p86, %p87
      %s90 = sadd.s32 %s89, 1
      %p93 = scmp.eq.s32.totalorder %s29, 1
      %p94 = scmp.ne.s32.totalorder %s89, %s91
      %p95 = scmp.eq.s32.totalorder %s29, 0
      %p96 = por %p94, %p95
      %p97 = scmp.ne.s32.totalorder %s89, %s91
      %p98 = scmp.eq.s32.totalorder %s34, 1
      %p99 = por %p97, %p98
      %p100 = scmp.ne.s32.totalorder %s91, %s92
      %p101 = scmp.eq.s32.totalorder %s34, 0
      %p102 = por %p100, %p101
      %p103 = scmp.ne.s32.totalorder %s91, %s92
      %p104 = scmp.eq.s32.totalorder %s35, 1
      %p105 = por %p103, %p104
      %p107 = scmp.ne.s32.totalorder %s92, %s106
      %p108 = scmp.eq.s32.totalorder %s35, 0
      %p109 = por %p107, %p108
      %s111 = sadd.s32 %s110, 1
      %p114 = scmp.eq.s32.totalorder %s29, 1
      %p115 = scmp.ne.s32.totalorder %s110, %s112
      %p116 = scmp.eq.s32.totalorder %s29, 0
      %p117 = por %p115, %p116
      %p118 = scmp.ne.s32.totalorder %s110, %s112
      %p119 = scmp.eq.s32.totalorder %s34, 1
      %p120 = por %p118, %p119
      %p121 = scmp.ne.s32.totalorder %s112, %s113
      %p122 = scmp.eq.s32.totalorder %s34, 0
      %p123 = por %p121, %p122
      %p124 = scmp.ne.s32.totalorder %s112, %s113
      %p125 = scmp.eq.s32.totalorder %s35, 1
      %p126 = por %p124, %p125
      %p128 = scmp.ne.s32.totalorder %s113, %s127
      %p129 = scmp.eq.s32.totalorder %s35, 0
      %p130 = por %p128, %p129
      %s131 = ssub.s32 %s29, %s36
      %p132 = scmp.eq.s32.totalorder %s131, 0
      %s134 = sadd.s32 %s133, 1
      %s135 = scalar_select %p132, %s133, %s134
      %p138 = pneg %p132
      %p139 = scmp.eq.s32.totalorder %s29, 1
      %p140 = por %p138, %p139
      %p141 = scmp.ne.s32.totalorder %s133, %s136
      %p142 = scmp.eq.s32.totalorder %s29, 0
      %p143 = por %p141, %p142
      %p144 = scmp.ne.s32.totalorder %s133, %s136
      %p145 = scmp.eq.s32.totalorder %s34, 1
      %p146 = por %p144, %p145
      %p147 = scmp.ne.s32.totalorder %s136, %s137
      %p148 = scmp.eq.s32.totalorder %s34, 0
      %p149 = por %p147, %p148
      %p150 = scmp.ne.s32.totalorder %s136, %s137
      %p151 = scmp.eq.s32.totalorder %s35, 1
      %p152 = por %p150, %p151
      %p154 = scmp.ne.s32.totalorder %s137, %s153
      %p155 = scmp.eq.s32.totalorder %s35, 0
      %p156 = por %p154, %p155
      %p157 = scmp.le.s32.totalorder 1, %s29
      %p158 = scmp.lt.s32.totalorder %s29, 3
      %p159 = pnand %p157, %p158
      %p160 = pneg %p159
      // Predicated region
      $region9: #{tpu_custom_call.1} parent=5 // pred_check
        _
      $region10: #{tpu_custom_call.1} parent=5 // pred_check_branch
        %162 = sbr.rel (%p159) target = $region12
      $region11: #{tpu_custom_call.1} parent=5 // pred_region
        %s163 = ssub.s32 %s29, 1
        // Predicated region
        $region13: #{tpu_custom_call.1} parent=11 // pred_check
          %p164 = pneg %p102
        $region14: #{tpu_custom_call.1} parent=11 // pred_check_branch
          %166 = sbr.rel (%p164) target = $region16
        $region15: #{tpu_custom_call.1} parent=11 // pred_region
          %168 = vsyncadd [#allocation11], 0
          %s170 = sshll.u32 %s3, 4
          %s171 = int_to_ptr.hbm [resolvable:$true] %s170
          %s172 = sshll.u32 [#allocation12], 4
          %s173 = int_to_ptr.vmem [resolvable:$true] %s172
          %175 = dma.hbm_to_vmem [thread:$0]  %s171, 128, %s173, [#allocation11]
        $region16: #{tpu_custom_call.1} parent=11 // pred_fallthru
          _
        // Predicated region
        $region17: #{tpu_custom_call.1} parent=11 // pred_check
          %p176 = pneg %p123
        $region18: #{tpu_custom_call.1} parent=11 // pred_check_branch
          %178 = sbr.rel (%p176) target = $region20
        $region19: #{tpu_custom_call.1} parent=11 // pred_region
          %180 = vsyncadd [#allocation14], 0
          %s182 = sshll.u32 %s4, 4
          %s183 = int_to_ptr.hbm [resolvable:$true] %s182
          %s184 = sshll.u32 [#allocation13], 4
          %s185 = int_to_ptr.vmem [resolvable:$true] %s184
          %187 = dma.hbm_to_vmem [thread:$0]  %s183, 128, %s185, [#allocation14]
        $region20: #{tpu_custom_call.1} parent=11 // pred_fallthru
          _
      $region12: #{tpu_custom_call.1} parent=5 // pred_fallthru
        _
      %p188 = scmp.lt.s32.totalorder %s29, 2
      // Predicated region
      $region21: #{tpu_custom_call.1} parent=5 // pred_check
        %p189 = pneg %p188
      $region22: #{tpu_custom_call.1} parent=5 // pred_check_branch
        %191 = sbr.rel (%p189) target = $region24
      $region23: #{tpu_custom_call.1} parent=5 // pred_region
        // Predicated region
        $region25: #{tpu_custom_call.1} parent=23 // pred_check
          %p192 = pneg %p49
        $region26: #{tpu_custom_call.1} parent=23 // pred_check_branch
          %194 = sbr.rel (%p192) target = $region28
        $region27: #{tpu_custom_call.1} parent=23 // pred_region
          %s195 = sand.u32 %s39, 1
          %s196 = scalar_lea.sflag [#allocation8], %s195
          %s197 = sand.u32 %s39, 1
          %s198 = smul.addr %s197, 32
          %s199 = scalar_lea.vmem [#allocation7], %s198
          %201 = vsyncadd %s196, 0
          %s202 = smul.addr %s29, 4
          %s203 = smul.addr %s202, 8
          %s204 = scalar_lea.hbm %s1, %s203
          %s206 = sshll.u32 %s204, 4
          %s207 = int_to_ptr.hbm [resolvable:$true] %s206
          %s208 = sshll.u32 %s199, 4
          %s209 = int_to_ptr.vmem [resolvable:$true] %s208
          %211 = dma.hbm_to_vmem [thread:$0]  %s207, 512, %s209, %s196
        $region28: #{tpu_custom_call.1} parent=23 // pred_fallthru
          _
        // Predicated region
        $region29: #{tpu_custom_call.1} parent=23 // pred_check
          %p212 = pneg %p75
        $region30: #{tpu_custom_call.1} parent=23 // pred_check_branch
          %214 = sbr.rel (%p212) target = $region32
        $region31: #{tpu_custom_call.1} parent=23 // pred_region
          %s215 = sand.u32 %s29, 1
          %s216 = scalar_lea.sflag [#allocation11], %s215
          %s217 = sand.u32 %s65, 1
          %s218 = smul.addr %s217, 24
          %s219 = scalar_lea.vmem [#allocation10], %s218
          %221 = vsyncadd %s216, 0
          %s222 = smul.addr %s29, 3
          %s223 = smul.addr %s222, 8
          %s224 = scalar_lea.hbm %s2, %s223
          %s226 = sshll.u32 %s224, 4
          %s227 = int_to_ptr.hbm [resolvable:$true] %s226
          %s228 = sshll.u32 %s219, 4
          %s229 = int_to_ptr.vmem [resolvable:$true] %s228
          %231 = dma.hbm_to_vmem [thread:$0]  %s227, 384, %s229, %s216
        $region32: #{tpu_custom_call.1} parent=23 // pred_fallthru
          _
      $region24: #{tpu_custom_call.1} parent=5 // pred_fallthru
        _
      %p232 = scmp.le.s32.totalorder 1, %s29
      %p233 = scmp.lt.s32.totalorder %s29, 3
      %p234 = pnand %p232, %p233
      %p235 = pneg %p234
      // Predicated region
      $region33: #{tpu_custom_call.1} parent=5 // pred_check
        _
      $region34: #{tpu_custom_call.1} parent=5 // pred_check_branch
        %237 = sbr.rel (%p234) target = $region36
      $region35: #{tpu_custom_call.1} parent=5 // pred_region
        %s238 = ssub.s32 %s29, 1
        %s239 = sand.u32 %s42, 1
        %s240 = scalar_lea.sflag [#allocation8], %s239
        %s241 = sand.u32 %s42, 1
        %s242 = smul.addr %s241, 32
        %s243 = scalar_lea.vmem [#allocation7], %s242
        // Predicated region
        $region37: #{tpu_custom_call.1} parent=35 // pred_check
          %p244 = pneg %p55
        $region38: #{tpu_custom_call.1} parent=35 // pred_check_branch
          %246 = sbr.rel (%p244) target = $region40
        $region39: #{tpu_custom_call.1} parent=35 // pred_region
          %248 = dma.done %s240, 512
        $region40: #{tpu_custom_call.1} parent=35 // pred_fallthru
          _
        %s249 = sand.u32 %s34, 1
        %s250 = scalar_lea.sflag [#allocation11], %s249
        %s251 = sand.u32 %s68, 1
        %s252 = smul.addr %s251, 24
        %s253 = scalar_lea.vmem [#allocation10], %s252
        // Predicated region
        $region41: #{tpu_custom_call.1} parent=35 // pred_check
          %p254 = pneg %p81
        $region42: #{tpu_custom_call.1} parent=35 // pred_check_branch
          %256 = sbr.rel (%p254) target = $region44
        $region43: #{tpu_custom_call.1} parent=35 // pred_region
          %258 = dma.done %s250, 384
        $region44: #{tpu_custom_call.1} parent=35 // pred_fallthru
          _
        // Predicated region
        $region45: #{tpu_custom_call.1} parent=35 // pred_check
          %p259 = pneg %p102
        $region46: #{tpu_custom_call.1} parent=35 // pred_check_branch
          %261 = sbr.rel (%p259) target = $region48
        $region47: #{tpu_custom_call.1} parent=35 // pred_region
          %263 = dma.done [#allocation11], 128
        $region48: #{tpu_custom_call.1} parent=35 // pred_fallthru
          _
        // Predicated region
        $region49: #{tpu_custom_call.1} parent=35 // pred_check
          %p264 = pneg %p123
        $region50: #{tpu_custom_call.1} parent=35 // pred_check_branch
          %266 = sbr.rel (%p264) target = $region52
        $region51: #{tpu_custom_call.1} parent=35 // pred_region
          %268 = dma.done [#allocation14], 128
        $region52: #{tpu_custom_call.1} parent=35 // pred_fallthru
          _
        %s269 = sand.u32 %s42, 1
        %s270 = scalar_lea.sflag [#allocation8], %s269
        %s271 = sand.u32 %s42, 1
        %s272 = smul.addr %s271, 32
        %s273 = scalar_lea.vmem [#allocation7], %s272
        %p274 = pneg %p55
        %p275 = pneg %p52
        %s276 = sand.u32 %s34, 1
        %s277 = scalar_lea.sflag [#allocation11], %s276
        %s278 = sand.u32 %s68, 1
        %s279 = smul.addr %s278, 24
        %s280 = scalar_lea.vmem [#allocation10], %s279
        %p281 = pneg %p81
        %p282 = pneg %p78
        %p283 = pneg %p102
        %p284 = pneg %p99
        %p285 = pneg %p123
        %p286 = pneg %p120
        %p287 = pneg %p149
        %p288 = pneg %p146
        %s289 = sand.u32 %s136, 1
        %s290 = scalar_lea.sflag [#allocation9], %s289
        %s291 = sand.u32 %s136, 1
        %s292 = smul.addr %s291, 24
        %s293 = scalar_lea.vmem [#allocation15], %s292
        %p294 = scmp.eq.s32.totalorder %s34, 0
        // Predicated region
        $region53: #{tpu_custom_call.1} parent=35 // pred_check
          %p295 = pneg %p294
        $region54: #{tpu_custom_call.1} parent=35 // pred_check_branch
          %297 = sbr.rel (%p295) target = $region56
        $region55: #{tpu_custom_call.1} parent=35 // pred_region
          %298 = vst [vmem:[#allocation3] sm:$0xff] 0.0
          %299 = vst [vmem:[#allocation3 + $0x8] sm:$0xff] 0.0
          %300 = vst [vmem:[#allocation3 + $0x10] sm:$0xff] 0.0
          %vm301 = vcmask 310272
          %302 = vst.msk [vmem:[#allocation3 + $0x18] sm:$0xff] %vm301, 0.0
        $region56: #{tpu_custom_call.1} parent=35 // pred_fallthru
          _
        %v303 = vld [vmem:[%s243] sm:$0xff]
        %v304 = vld [vmem:[%s243 + $0x8] sm:$0xff]
        %v305 = vld [vmem:[%s243 + $0x10] sm:$0xff]
        %v306 = vld [vmem:[%s243 + $0x18] sm:$0xff]
        %v307 = vld [vmem:[%s253] sm:$0xff]
        %v308 = vld [vmem:[%s253 + $0x8] sm:$0xff]
        %v309 = vld [vmem:[%s253 + $0x10] sm:$0xff]
        %s310 = sld [smem:[#allocation6 + %s34]]
        %311 = vst [vmem:[#allocation2] sm:$0xff] %v303
        %312 = vst [vmem:[#allocation2 + $0x8] sm:$0xff] %v304
        %313 = vst [vmem:[#allocation2 + $0x10] sm:$0xff] %v305
        %318 = vrot.lane.b32.xlu0 %v303, 127
        %v319 = vpop.permute.xlu0 %318
        %320 = vrot.lane.b32.xlu0 %v304, 127
        %v321 = vpop.permute.xlu0 %320
        %322 = vrot.lane.b32.xlu0 %v305, 127
        %v323 = vpop.permute.xlu0 %322
        %324 = vrot.lane.b32.xlu0 %v306, 127
        %v325 = vpop.permute.xlu0 %324
        %vm326 = vcmask 1039360
        %v327 = vsel %vm326, %v319, %v321
        %v328 = vsel %vm326, %v321, %v323
        %v329 = vsel %vm326, %v323, %v325
        %333 = vst [vmem:[#allocation2 + $0x18] sm:$0xff] %v327
        %334 = vst [vmem:[#allocation2 + $0x20] sm:$0xff] %v328
        %335 = vst [vmem:[#allocation2 + $0x28] sm:$0xff] %v329
        %336 = vrot.lane.b32.xlu0 %v303, 126
        %v337 = vpop.permute.xlu0 %336
        %338 = vrot.lane.b32.xlu0 %v304, 126
        %v339 = vpop.permute.xlu0 %338
        %340 = vrot.lane.b32.xlu0 %v305, 126
        %v341 = vpop.permute.xlu0 %340
        %342 = vrot.lane.b32.xlu0 %v306, 126
        %v343 = vpop.permute.xlu0 %342
        %vm344 = vcmask 1031168
        %v345 = vsel %vm344, %v337, %v339
        %v346 = vsel %vm344, %v339, %v341
        %v347 = vsel %vm344, %v341, %v343
        %351 = vst [vmem:[#allocation2 + $0x30] sm:$0xff] %v345
        %352 = vst [vmem:[#allocation2 + $0x38] sm:$0xff] %v346
        %353 = vst [vmem:[#allocation2 + $0x40] sm:$0xff] %v347
        %354 = vrot.lane.b32.xlu0 %v303, 110
        %v355 = vpop.permute.xlu0 %354
        %356 = vrot.lane.b32.xlu0 %v304, 110
        %v357 = vpop.permute.xlu0 %356
        %358 = vrot.lane.b32.xlu0 %v305, 110
        %v359 = vpop.permute.xlu0 %358
        %360 = vrot.lane.b32.xlu0 %v306, 110
        %v361 = vpop.permute.xlu0 %360
        %vm362 = vcmask 900096
        %v363 = vsel %vm362, %v355, %v357
        %v364 = vsel %vm362, %v357, %v359
        %v365 = vsel %vm362, %v359, %v361
        %369 = vst [vmem:[#allocation2 + $0x48] sm:$0xff] %v363
        %370 = vst [vmem:[#allocation2 + $0x50] sm:$0xff] %v364
        %371 = vst [vmem:[#allocation2 + $0x58] sm:$0xff] %v365
        %372 = vrot.lane.b32.xlu0 %v303, 109
        %v373 = vpop.permute.xlu0 %372
        %374 = vrot.lane.b32.xlu0 %v304, 109
        %v375 = vpop.permute.xlu0 %374
        %376 = vrot.lane.b32.xlu0 %v305, 109
        %v377 = vpop.permute.xlu0 %376
        %378 = vrot.lane.b32.xlu0 %v306, 109
        %v379 = vpop.permute.xlu0 %378
        %vm380 = vcmask 891904
        %v381 = vsel %vm380, %v373, %v375
        %v382 = vsel %vm380, %v375, %v377
        %v383 = vsel %vm380, %v377, %v379
        %387 = vst [vmem:[#allocation2 + $0x60] sm:$0xff] %v381
        %388 = vst [vmem:[#allocation2 + $0x68] sm:$0xff] %v382
        %389 = vst [vmem:[#allocation2 + $0x70] sm:$0xff] %v383
        %390 = vrot.lane.b32.xlu0 %v303, 108
        %v391 = vpop.permute.xlu0 %390
        %392 = vrot.lane.b32.xlu0 %v304, 108
        %v393 = vpop.permute.xlu0 %392
        %394 = vrot.lane.b32.xlu0 %v305, 108
        %v395 = vpop.permute.xlu0 %394
        %396 = vrot.lane.b32.xlu0 %v306, 108
        %v397 = vpop.permute.xlu0 %396
        %vm398 = vcmask 883712
        %v399 = vsel %vm398, %v391, %v393
        %v400 = vsel %vm398, %v393, %v395
        %v401 = vsel %vm398, %v395, %v397
        %405 = vst [vmem:[#allocation2 + $0x78] sm:$0xff] %v399
        %406 = vst [vmem:[#allocation2 + $0x80] sm:$0xff] %v400
        %407 = vst [vmem:[#allocation2 + $0x88] sm:$0xff] %v401
        %408 = vrot.lane.b32.xlu0 %v303, 92
        %v409 = vpop.permute.xlu0 %408
        %410 = vrot.lane.b32.xlu0 %v304, 92
        %v411 = vpop.permute.xlu0 %410
        %412 = vrot.lane.b32.xlu0 %v305, 92
        %v413 = vpop.permute.xlu0 %412
        %414 = vrot.lane.b32.xlu0 %v306, 92
        %v415 = vpop.permute.xlu0 %414
        %vm416 = vcmask 752640
        %v417 = vsel %vm416, %v409, %v411
        %v418 = vsel %vm416, %v411, %v413
        %v419 = vsel %vm416, %v413, %v415
        %423 = vst [vmem:[#allocation2 + $0x90] sm:$0xff] %v417
        %424 = vst [vmem:[#allocation2 + $0x98] sm:$0xff] %v418
        %425 = vst [vmem:[#allocation2 + $0xa0] sm:$0xff] %v419
        %426 = vrot.lane.b32.xlu0 %v303, 91
        %v427 = vpop.permute.xlu0 %426
        %428 = vrot.lane.b32.xlu0 %v304, 91
        %v429 = vpop.permute.xlu0 %428
        %430 = vrot.lane.b32.xlu0 %v305, 91
        %v431 = vpop.permute.xlu0 %430
        %432 = vrot.lane.b32.xlu0 %v306, 91
        %v433 = vpop.permute.xlu0 %432
        %vm434 = vcmask 744448
        %v435 = vsel %vm434, %v427, %v429
        %v436 = vsel %vm434, %v429, %v431
        %v437 = vsel %vm434, %v431, %v433
        %441 = vst [vmem:[#allocation2 + $0xa8] sm:$0xff] %v435
        %442 = vst [vmem:[#allocation2 + $0xb0] sm:$0xff] %v436
        %443 = vst [vmem:[#allocation2 + $0xb8] sm:$0xff] %v437
        %444 = vrot.lane.b32.xlu0 %v303, 90
        %v445 = vpop.permute.xlu0 %444
        %446 = vrot.lane.b32.xlu0 %v304, 90
        %v447 = vpop.permute.xlu0 %446
        %448 = vrot.lane.b32.xlu0 %v305, 90
        %v449 = vpop.permute.xlu0 %448
        %450 = vrot.lane.b32.xlu0 %v306, 90
        %v451 = vpop.permute.xlu0 %450
        %vm452 = vcmask 736256
        %v453 = vsel %vm452, %v445, %v447
        %v454 = vsel %vm452, %v447, %v449
        %v455 = vsel %vm452, %v449, %v451
        %459 = vst [vmem:[#allocation2 + $0xc0] sm:$0xff] %v453
        %460 = vst [vmem:[#allocation2 + $0xc8] sm:$0xff] %v454
        %461 = vst [vmem:[#allocation2 + $0xd0] sm:$0xff] %v455
        %v462 = vld [vmem:[#allocation12] sm:$0xff]
        %v463 = vld [vmem:[#allocation2] sm:$0xff]
        %v464 = vld [vmem:[#allocation2 + $0x8] sm:$0xff]
        %v465 = vld [vmem:[#allocation2 + $0x10] sm:$0xff]
        %v466 = vld [vmem:[#allocation2 + $0x18] sm:$0xff]
        %v467 = vld [vmem:[#allocation2 + $0x20] sm:$0xff]
        %v468 = vld [vmem:[#allocation2 + $0x28] sm:$0xff]
        %v469 = vld [vmem:[#allocation2 + $0x30] sm:$0xff]
        %v470 = vld [vmem:[#allocation2 + $0x38] sm:$0xff]
        %v471 = vld [vmem:[#allocation2 + $0x40] sm:$0xff]
        %v472 = vld [vmem:[#allocation2 + $0x48] sm:$0xff]
        %v473 = vld [vmem:[#allocation2 + $0x50] sm:$0xff]
        %v474 = vld [vmem:[#allocation2 + $0x58] sm:$0xff]
        %v475 = vld [vmem:[#allocation2 + $0x60] sm:$0xff]
        %v476 = vld [vmem:[#allocation2 + $0x68] sm:$0xff]
        %v477 = vld [vmem:[#allocation2 + $0x70] sm:$0xff]
        %v478 = vld [vmem:[#allocation2 + $0x78] sm:$0xff]
        %v479 = vld [vmem:[#allocation2 + $0x80] sm:$0xff]
        %v480 = vld [vmem:[#allocation2 + $0x88] sm:$0xff]
        %v481 = vld [vmem:[#allocation2 + $0x90] sm:$0xff]
        %v482 = vld [vmem:[#allocation2 + $0x98] sm:$0xff]
        %v483 = vld [vmem:[#allocation2 + $0xa0] sm:$0xff]
        %v484 = vld [vmem:[#allocation2 + $0xa8] sm:$0xff]
        %v485 = vld [vmem:[#allocation2 + $0xb0] sm:$0xff]
        %v486 = vld [vmem:[#allocation2 + $0xb8] sm:$0xff]
        %v487 = vld [vmem:[#allocation2 + $0xc0] sm:$0xff]
        %v488 = vld [vmem:[#allocation2 + $0xc8] sm:$0xff]
        %v489 = vld [vmem:[#allocation2 + $0xd0] sm:$0xff]
        %vm490 = vcmask 588800
        %v492 = vsel %vm490, %v462, 0
        %494 = vmatpush.msra.mxu0 0.0
        %495 = vmatpush.msra.mxu0 0.0
        %496 = vmatpush.msra.mxu0 0.0
        %497 = vmatpush.msra.mxu0 0.0
        %498 = vmatpush.msra.mxu0 0.0
        %499 = vmatpush.msra.mxu0 0.0
        %500 = vmatpush.msra.mxu0 0.0
        %501 = vmatpush.msra.mxu0 %v487
        %502 = vmatpush.msra.mxu0 %v484
        %503 = vmatpush.msra.mxu0 %v481
        %504 = vmatpush.msra.mxu0 %v478
        %505 = vmatpush.msra.mxu0 %v475
        %506 = vmatpush.msra.mxu0 %v472
        %507 = vmatpush.msra.mxu0 %v469
        %508 = vmatpush.msra.mxu0 %v466
        %509 = vmatpush.msra.mxu0 %v463
        %510 = vmatmul.f32.gmra.mxu0 %v492
        %v511 = vpop.f32.mrf.mxu0
        %v512 = vadd.f32 1e-05, %v511
        %513 = vdwg.mxu0
        %514 = vmatpush.msra.mxu0 0.0
        %515 = vmatpush.msra.mxu0 0.0
        %516 = vmatpush.msra.mxu0 0.0
        %517 = vmatpush.msra.mxu0 0.0
        %518 = vmatpush.msra.mxu0 0.0
        %519 = vmatpush.msra.mxu0 0.0
        %520 = vmatpush.msra.mxu0 0.0
        %521 = vmatpush.msra.mxu0 %v488
        %522 = vmatpush.msra.mxu0 %v485
        %523 = vmatpush.msra.mxu0 %v482
        %524 = vmatpush.msra.mxu0 %v479
        %525 = vmatpush.msra.mxu0 %v476
        %526 = vmatpush.msra.mxu0 %v473
        %527 = vmatpush.msra.mxu0 %v470
        %528 = vmatpush.msra.mxu0 %v467
        %529 = vmatpush.msra.mxu0 %v464
        %530 = vmatmul.f32.gmra.mxu0 %v492
        %v531 = vpop.f32.mrf.mxu0
        %v532 = vadd.f32 1e-05, %v531
        %533 = vdwg.mxu0
        %534 = vmatpush.msra.mxu0 0.0
        %535 = vmatpush.msra.mxu0 0.0
        %536 = vmatpush.msra.mxu0 0.0
        %537 = vmatpush.msra.mxu0 0.0
        %538 = vmatpush.msra.mxu0 0.0
        %539 = vmatpush.msra.mxu0 0.0
        %540 = vmatpush.msra.mxu0 0.0
        %541 = vmatpush.msra.mxu0 %v489
        %542 = vmatpush.msra.mxu0 %v486
        %543 = vmatpush.msra.mxu0 %v483
        %544 = vmatpush.msra.mxu0 %v480
        %545 = vmatpush.msra.mxu0 %v477
        %546 = vmatpush.msra.mxu0 %v474
        %547 = vmatpush.msra.mxu0 %v471
        %548 = vmatpush.msra.mxu0 %v468
        %549 = vmatpush.msra.mxu0 %v465
        %550 = vmatmul.f32.gmra.mxu0 %v492
        %v551 = vpop.f32.mrf.mxu0
        %v552 = vadd.f32 1e-05, %v551
        %553 = vdwg.mxu0
        %v554 = vstv %s310
        %vm555 = vcmp.ge.f32.partialorder %v307, %v554
        %vm556 = vcmp.ge.f32.partialorder %v308, %v554
        %vm557 = vcmp.ge.f32.partialorder %v309, %v554
        %v558 = vsel %vm555, %v307, 0.0
        %v559 = vsel %vm556, %v308, 0.0
        %v560 = vsel %vm557, %v309, 0.0
        %v561 = vrcp.pop %v512
        %v562 = vmul.f32 %v512, %v561
        %v563 = vsub.f32 1.0, %v562
        %v564 = vmul.f32 %v561, %v563
        %v565 = vadd.f32 %v561, %v564
        %vm566 = vweird.f32 %v512
        %vm567 = vweird.f32 %v561
        %vm568 = vmor %vm566, %vm567
        %v569 = vsel %vm568, %v561, %v565
        %v570 = vand.u32 2147483647, %v512
        %vm571 = vcmp.eq.f32.partialorder %v570, 8.507059e+37
        %v572 = vand.u32 %v512, 2147483648
        %v573 = vor.u32 1.1754944e-38, %v572
        %v574 = vsel %vm571, %v573, %v569
        %v575 = vrcp.pop %v532
        %v576 = vmul.f32 %v532, %v575
        %v577 = vsub.f32 1.0, %v576
        %v578 = vmul.f32 %v575, %v577
        %v579 = vadd.f32 %v575, %v578
        %vm580 = vweird.f32 %v532
        %vm581 = vweird.f32 %v575
        %vm582 = vmor %vm580, %vm581
        %v583 = vsel %vm582, %v575, %v579
        %v584 = vand.u32 2147483647, %v532
        %vm585 = vcmp.eq.f32.partialorder %v584, 8.507059e+37
        %v586 = vand.u32 %v532, 2147483648
        %v587 = vor.u32 1.1754944e-38, %v586
        %v588 = vsel %vm585, %v587, %v583
        %v589 = vrcp.pop %v552
        %v590 = vmul.f32 %v552, %v589
        %v591 = vsub.f32 1.0, %v590
        %v592 = vmul.f32 %v589, %v591
        %v593 = vadd.f32 %v589, %v592
        %vm594 = vweird.f32 %v552
        %vm595 = vweird.f32 %v589
        %vm596 = vmor %vm594, %vm595
        %v597 = vsel %vm596, %v589, %v593
        %v598 = vand.u32 2147483647, %v552
        %vm599 = vcmp.eq.f32.partialorder %v598, 8.507059e+37
        %v600 = vand.u32 %v552, 2147483648
        %v601 = vor.u32 1.1754944e-38, %v600
        %v602 = vsel %vm599, %v601, %v597
        %v603 = vmul.f32 %v558, %v574
        %v604 = vmul.f32 %v559, %v588
        %v605 = vmul.f32 %v560, %v602
        %609 = vrot.lane.b32.xlu0 %v603, 19
        %v610 = vpop.permute.xlu0 %609
        %611 = vrot.lane.b32.xlu0 %v604, 19
        %v612 = vpop.permute.xlu0 %611
        %613 = vrot.lane.b32.xlu0 %v605, 19
        %v614 = vpop.permute.xlu0 %613
        %vm615 = vcmask 154624
        %v616 = vsel %vm615, %v610, %v612
        %v617 = vsel %vm615, %v612, %v614
        %vm622 = vcmask 1047704
        %623 = vst.msk [vmem:[#allocation3] sm:$0xff] %vm622, %v610
        %624 = vst [vmem:[#allocation3 + $0x8] sm:$0xff] %v616
        %625 = vst [vmem:[#allocation3 + $0x10] sm:$0xff] %v617
        %626 = vst.msk [vmem:[#allocation3 + $0x18] sm:$0xff] %vm615, %v614
        %v627 = vld [vmem:[#allocation3] sm:$0xff]
        %v628 = vld [vmem:[#allocation3 + $0x8] sm:$0xff]
        %v629 = vld [vmem:[#allocation3 + $0x10] sm:$0xff]
        %v630 = vld [vmem:[#allocation3 + $0x18] sm:$0xff]
        %635 = vrot.lane.b32.xlu0 %v627, 90
        %v636 = vpop.permute.xlu0 %635
        %637 = vrot.lane.b32.xlu0 %v628, 90
        %v638 = vpop.permute.xlu0 %637
        %639 = vrot.lane.b32.xlu0 %v629, 90
        %v640 = vpop.permute.xlu0 %639
        %641 = vrot.lane.b32.xlu0 %v630, 90
        %v642 = vpop.permute.xlu0 %641
        %v643 = vsel %vm452, %v636, %v638
        %v644 = vsel %vm452, %v638, %v640
        %v645 = vsel %vm452, %v640, %v642
        %649 = vst [vmem:[#allocation4] sm:$0xff] %v643
        %650 = vst [vmem:[#allocation4 + $0x8] sm:$0xff] %v644
        %651 = vst [vmem:[#allocation4 + $0x10] sm:$0xff] %v645
        %652 = vrot.lane.b32.xlu0 %v627, 91
        %v653 = vpop.permute.xlu0 %652
        %654 = vrot.lane.b32.xlu0 %v628, 91
        %v655 = vpop.permute.xlu0 %654
        %656 = vrot.lane.b32.xlu0 %v629, 91
        %v657 = vpop.permute.xlu0 %656
        %658 = vrot.lane.b32.xlu0 %v630, 91
        %v659 = vpop.permute.xlu0 %658
        %v660 = vsel %vm434, %v653, %v655
        %v661 = vsel %vm434, %v655, %v657
        %v662 = vsel %vm434, %v657, %v659
        %666 = vst [vmem:[#allocation4 + $0x18] sm:$0xff] %v660
        %667 = vst [vmem:[#allocation4 + $0x20] sm:$0xff] %v661
        %668 = vst [vmem:[#allocation4 + $0x28] sm:$0xff] %v662
        %669 = vrot.lane.b32.xlu0 %v627, 92
        %v670 = vpop.permute.xlu0 %669
        %671 = vrot.lane.b32.xlu0 %v628, 92
        %v672 = vpop.permute.xlu0 %671
        %673 = vrot.lane.b32.xlu0 %v629, 92
        %v674 = vpop.permute.xlu0 %673
        %675 = vrot.lane.b32.xlu0 %v630, 92
        %v676 = vpop.permute.xlu0 %675
        %v677 = vsel %vm416, %v670, %v672
        %v678 = vsel %vm416, %v672, %v674
        %v679 = vsel %vm416, %v674, %v676
        %683 = vst [vmem:[#allocation4 + $0x30] sm:$0xff] %v677
        %684 = vst [vmem:[#allocation4 + $0x38] sm:$0xff] %v678
        %685 = vst [vmem:[#allocation4 + $0x40] sm:$0xff] %v679
        %686 = vrot.lane.b32.xlu0 %v627, 108
        %v687 = vpop.permute.xlu0 %686
        %688 = vrot.lane.b32.xlu0 %v628, 108
        %v689 = vpop.permute.xlu0 %688
        %690 = vrot.lane.b32.xlu0 %v629, 108
        %v691 = vpop.permute.xlu0 %690
        %692 = vrot.lane.b32.xlu0 %v630, 108
        %v693 = vpop.permute.xlu0 %692
        %v694 = vsel %vm398, %v687, %v689
        %v695 = vsel %vm398, %v689, %v691
        %v696 = vsel %vm398, %v691, %v693
        %700 = vst [vmem:[#allocation4 + $0x48] sm:$0xff] %v694
        %701 = vst [vmem:[#allocation4 + $0x50] sm:$0xff] %v695
        %702 = vst [vmem:[#allocation4 + $0x58] sm:$0xff] %v696
        %703 = vrot.lane.b32.xlu0 %v627, 109
        %v704 = vpop.permute.xlu0 %703
        %705 = vrot.lane.b32.xlu0 %v628, 109
        %v706 = vpop.permute.xlu0 %705
        %707 = vrot.lane.b32.xlu0 %v629, 109
        %v708 = vpop.permute.xlu0 %707
        %709 = vrot.lane.b32.xlu0 %v630, 109
        %v710 = vpop.permute.xlu0 %709
        %v711 = vsel %vm380, %v704, %v706
        %v712 = vsel %vm380, %v706, %v708
        %v713 = vsel %vm380, %v708, %v710
        %717 = vst [vmem:[#allocation4 + $0x60] sm:$0xff] %v711
        %718 = vst [vmem:[#allocation4 + $0x68] sm:$0xff] %v712
        %719 = vst [vmem:[#allocation4 + $0x70] sm:$0xff] %v713
        %720 = vrot.lane.b32.xlu0 %v627, 110
        %v721 = vpop.permute.xlu0 %720
        %722 = vrot.lane.b32.xlu0 %v628, 110
        %v723 = vpop.permute.xlu0 %722
        %724 = vrot.lane.b32.xlu0 %v629, 110
        %v725 = vpop.permute.xlu0 %724
        %726 = vrot.lane.b32.xlu0 %v630, 110
        %v727 = vpop.permute.xlu0 %726
        %v728 = vsel %vm362, %v721, %v723
        %v729 = vsel %vm362, %v723, %v725
        %v730 = vsel %vm362, %v725, %v727
        %734 = vst [vmem:[#allocation4 + $0x78] sm:$0xff] %v728
        %735 = vst [vmem:[#allocation4 + $0x80] sm:$0xff] %v729
        %736 = vst [vmem:[#allocation4 + $0x88] sm:$0xff] %v730
        %737 = vrot.lane.b32.xlu0 %v627, 126
        %v738 = vpop.permute.xlu0 %737
        %739 = vrot.lane.b32.xlu0 %v628, 126
        %v740 = vpop.permute.xlu0 %739
        %741 = vrot.lane.b32.xlu0 %v629, 126
        %v742 = vpop.permute.xlu0 %741
        %743 = vrot.lane.b32.xlu0 %v630, 126
        %v744 = vpop.permute.xlu0 %743
        %v745 = vsel %vm344, %v738, %v740
        %v746 = vsel %vm344, %v740, %v742
        %v747 = vsel %vm344, %v742, %v744
        %751 = vst [vmem:[#allocation4 + $0x90] sm:$0xff] %v745
        %752 = vst [vmem:[#allocation4 + $0x98] sm:$0xff] %v746
        %753 = vst [vmem:[#allocation4 + $0xa0] sm:$0xff] %v747
        %754 = vrot.lane.b32.xlu0 %v627, 127
        %v755 = vpop.permute.xlu0 %754
        %756 = vrot.lane.b32.xlu0 %v628, 127
        %v757 = vpop.permute.xlu0 %756
        %758 = vrot.lane.b32.xlu0 %v629, 127
        %v759 = vpop.permute.xlu0 %758
        %760 = vrot.lane.b32.xlu0 %v630, 127
        %v761 = vpop.permute.xlu0 %760
        %v762 = vsel %vm326, %v755, %v757
        %v763 = vsel %vm326, %v757, %v759
        %v764 = vsel %vm326, %v759, %v761
        %768 = vst [vmem:[#allocation4 + $0xa8] sm:$0xff] %v762
        %769 = vst [vmem:[#allocation4 + $0xb0] sm:$0xff] %v763
        %770 = vst [vmem:[#allocation4 + $0xb8] sm:$0xff] %v764
        %771 = vst [vmem:[#allocation4 + $0xc0] sm:$0xff] %v627
        %772 = vst [vmem:[#allocation4 + $0xc8] sm:$0xff] %v628
        %773 = vst [vmem:[#allocation4 + $0xd0] sm:$0xff] %v629
        %v774 = vld [vmem:[#allocation13] sm:$0xff]
        %v775 = vld [vmem:[#allocation4] sm:$0xff]
        %v776 = vld [vmem:[#allocation4 + $0x8] sm:$0xff]
        %v777 = vld [vmem:[#allocation4 + $0x10] sm:$0xff]
        %v778 = vld [vmem:[#allocation4 + $0x18] sm:$0xff]
        %v779 = vld [vmem:[#allocation4 + $0x20] sm:$0xff]
        %v780 = vld [vmem:[#allocation4 + $0x28] sm:$0xff]
        %v781 = vld [vmem:[#allocation4 + $0x30] sm:$0xff]
        %v782 = vld [vmem:[#allocation4 + $0x38] sm:$0xff]
        %v783 = vld [vmem:[#allocation4 + $0x40] sm:$0xff]
        %v784 = vld [vmem:[#allocation4 + $0x48] sm:$0xff]
        %v785 = vld [vmem:[#allocation4 + $0x50] sm:$0xff]
        %v786 = vld [vmem:[#allocation4 + $0x58] sm:$0xff]
        %v787 = vld [vmem:[#allocation4 + $0x60] sm:$0xff]
        %v788 = vld [vmem:[#allocation4 + $0x68] sm:$0xff]
        %v789 = vld [vmem:[#allocation4 + $0x70] sm:$0xff]
        %v790 = vld [vmem:[#allocation4 + $0x78] sm:$0xff]
        %v791 = vld [vmem:[#allocation4 + $0x80] sm:$0xff]
        %v792 = vld [vmem:[#allocation4 + $0x88] sm:$0xff]
        %v793 = vld [vmem:[#allocation4 + $0x90] sm:$0xff]
        %v794 = vld [vmem:[#allocation4 + $0x98] sm:$0xff]
        %v795 = vld [vmem:[#allocation4 + $0xa0] sm:$0xff]
        %v796 = vld [vmem:[#allocation4 + $0xa8] sm:$0xff]
        %v797 = vld [vmem:[#allocation4 + $0xb0] sm:$0xff]
        %v798 = vld [vmem:[#allocation4 + $0xb8] sm:$0xff]
        %v799 = vld [vmem:[#allocation4 + $0xc0] sm:$0xff]
        %v800 = vld [vmem:[#allocation4 + $0xc8] sm:$0xff]
        %v801 = vld [vmem:[#allocation4 + $0xd0] sm:$0xff]
        %v803 = vsel %vm490, %v774, 0
        %805 = vmatpush.msra.mxu0 0.0
        %806 = vmatpush.msra.mxu0 0.0
        %807 = vmatpush.msra.mxu0 0.0
        %808 = vmatpush.msra.mxu0 0.0
        %809 = vmatpush.msra.mxu0 0.0
        %810 = vmatpush.msra.mxu0 0.0
        %811 = vmatpush.msra.mxu0 0.0
        %812 = vmatpush.msra.mxu0 %v799
        %813 = vmatpush.msra.mxu0 %v796
        %814 = vmatpush.msra.mxu0 %v793
        %815 = vmatpush.msra.mxu0 %v790
        %816 = vmatpush.msra.mxu0 %v787
        %817 = vmatpush.msra.mxu0 %v784
        %818 = vmatpush.msra.mxu0 %v781
        %819 = vmatpush.msra.mxu0 %v778
        %820 = vmatpush.msra.mxu0 %v775
        %821 = vmatmul.f32.gmra.mxu0 %v803
        %v822 = vpop.f32.mrf.mxu0
        %v823 = vadd.f32 0.0, %v822
        %824 = vdwg.mxu0
        %825 = vmatpush.msra.mxu0 0.0
        %826 = vmatpush.msra.mxu0 0.0
        %827 = vmatpush.msra.mxu0 0.0
        %828 = vmatpush.msra.mxu0 0.0
        %829 = vmatpush.msra.mxu0 0.0
        %830 = vmatpush.msra.mxu0 0.0
        %831 = vmatpush.msra.mxu0 0.0
        %832 = vmatpush.msra.mxu0 %v800
        %833 = vmatpush.msra.mxu0 %v797
        %834 = vmatpush.msra.mxu0 %v794
        %835 = vmatpush.msra.mxu0 %v791
        %836 = vmatpush.msra.mxu0 %v788
        %837 = vmatpush.msra.mxu0 %v785
        %838 = vmatpush.msra.mxu0 %v782
        %839 = vmatpush.msra.mxu0 %v779
        %840 = vmatpush.msra.mxu0 %v776
        %841 = vmatmul.f32.gmra.mxu0 %v803
        %v842 = vpop.f32.mrf.mxu0
        %v843 = vadd.f32 0.0, %v842
        %844 = vdwg.mxu0
        %845 = vmatpush.msra.mxu0 0.0
        %846 = vmatpush.msra.mxu0 0.0
        %847 = vmatpush.msra.mxu0 0.0
        %848 = vmatpush.msra.mxu0 0.0
        %849 = vmatpush.msra.mxu0 0.0
        %850 = vmatpush.msra.mxu0 0.0
        %851 = vmatpush.msra.mxu0 0.0
        %852 = vmatpush.msra.mxu0 %v801
        %853 = vmatpush.msra.mxu0 %v798
        %854 = vmatpush.msra.mxu0 %v795
        %855 = vmatpush.msra.mxu0 %v792
        %856 = vmatpush.msra.mxu0 %v789
        %857 = vmatpush.msra.mxu0 %v786
        %858 = vmatpush.msra.mxu0 %v783
        %859 = vmatpush.msra.mxu0 %v780
        %860 = vmatpush.msra.mxu0 %v777
        %861 = vmatmul.f32.gmra.mxu0 %v803
        %v862 = vpop.f32.mrf.mxu0
        %v863 = vadd.f32 0.0, %v862
        %864 = vdwg.mxu0
        %868 = vrot.lane.b32.xlu0 %v823, 19
        %v869 = vpop.permute.xlu0 %868
        %870 = vrot.lane.b32.xlu0 %v843, 19
        %v871 = vpop.permute.xlu0 %870
        %872 = vrot.lane.b32.xlu0 %v863, 19
        %v873 = vpop.permute.xlu0 %872
        %v874 = vsel %vm615, %v869, %v871
        %v875 = vsel %vm615, %v871, %v873
        %v880 = vmul.f32 %v303, %v869
        %v881 = vmul.f32 %v304, %v874
        %v882 = vmul.f32 %v305, %v875
        %v883 = vmul.f32 %v306, %v873
        %888 = vrot.lane.b32.xlu0 %v880, 109
        %v889 = vpop.permute.xlu0 %888
        %890 = vrot.lane.b32.xlu0 %v881, 109
        %v891 = vpop.permute.xlu0 %890
        %892 = vrot.lane.b32.xlu0 %v882, 109
        %v893 = vpop.permute.xlu0 %892
        %894 = vrot.lane.b32.xlu0 %v883, 109
        %v895 = vpop.permute.xlu0 %894
        %v896 = vsel %vm380, %v889, %v891
        %v897 = vsel %vm380, %v891, %v893
        %v898 = vsel %vm380, %v893, %v895
        %902 = vst [vmem:[%s293] sm:$0xff] %v896
        %903 = vst [vmem:[%s293 + $0x8] sm:$0xff] %v897
        %904 = vst [vmem:[%s293 + $0x10] sm:$0xff] %v898
        %s905 = sand.u32 %s136, 1
        %s906 = scalar_lea.sflag [#allocation9], %s905
        %s907 = sand.u32 %s136, 1
        %s908 = smul.addr %s907, 24
        %s909 = scalar_lea.vmem [#allocation15], %s908
        // Predicated region
        $region57: #{tpu_custom_call.1} parent=35 // pred_check
          %p910 = pneg %p146
        $region58: #{tpu_custom_call.1} parent=35 // pred_check_branch
          %912 = sbr.rel (%p910) target = $region60
        $region59: #{tpu_custom_call.1} parent=35 // pred_region
          %914 = vsyncadd %s906, 0
          %s915 = smul.addr %s34, 3
          %s916 = smul.addr %s915, 8
          %s917 = scalar_lea.hbm %s5, %s916
          %s919 = sshll.u32 %s909, 4
          %s920 = int_to_ptr.vmem [resolvable:$true] %s919
          %s921 = sshll.u32 %s917, 4
          %s922 = int_to_ptr.hbm [resolvable:$true] %s921
          %924 = dma.vmem_to_hbm [thread:$0]  %s920, 384, %s922, %s906
        $region60: #{tpu_custom_call.1} parent=35 // pred_fallthru
          _
      $region36: #{tpu_custom_call.1} parent=5 // pred_fallthru
        _
      %p925 = scmp.le.s32.totalorder 2, %s29
      // Predicated region
      $region61: #{tpu_custom_call.1} parent=5 // pred_check
        %p926 = pneg %p925
      $region62: #{tpu_custom_call.1} parent=5 // pred_check_branch
        %928 = sbr.rel (%p926) target = $region64
      $region63: #{tpu_custom_call.1} parent=5 // pred_region
        %s929 = ssub.s32 %s29, 2
        // Predicated region
        $region65: #{tpu_custom_call.1} parent=63 // pred_check
          %p930 = pneg %p152
        $region66: #{tpu_custom_call.1} parent=63 // pred_check_branch
          %932 = sbr.rel (%p930) target = $region68
        $region67: #{tpu_custom_call.1} parent=63 // pred_region
          %s933 = sand.u32 %s137, 1
          %s934 = scalar_lea.sflag [#allocation9], %s933
          %s935 = sand.u32 %s137, 1
          %s936 = smul.addr %s935, 24
          %s937 = scalar_lea.vmem [#allocation15], %s936
          %939 = dma.done %s934, 384
        $region68: #{tpu_custom_call.1} parent=63 // pred_fallthru
          _
      $region64: #{tpu_custom_call.1} parent=5 // pred_fallthru
        _
    $region6: #{tpu_custom_call.1} parent=1 // loop_footer
      %s33 = sadd.s32 1, %s29
    $region7: #{tpu_custom_call.1} parent=1 // loop_footer_branch
      %28 = sbr.rel target = $region3
    $region8: #{tpu_custom_call.1} parent=1 // loop_exit
      _
    %940 = vsyncpa [#allocation8], 1
    %s941 = scalar_lea.sflag [#allocation8], 1
    %942 = vsyncpa %s941, 1
    %943 = vsyncpa [#allocation11], 1
    %s944 = scalar_lea.sflag [#allocation11], 1
    %945 = vsyncpa %s944, 1
    %946 = vsyncpa [#allocation14], 1
    %947 = vsyncpa [#allocation9], 1
    %s948 = scalar_lea.sflag [#allocation9], 1
    %949 = vsyncpa %s948, 1

</llo_original>
